<compile_context>
chip_gen: v7x
topology: tpu7x:2x2x1
jax: 0.10.0
libtpu: 0.0.40
codegen_flags: <defaults>
</compile_context>

<pallas_src>
import jax
import jax.numpy as jnp
from jax.experimental import pallas as pl
from jax.experimental.pallas import tpu as pltpu


def _swap_kernel(scalars_ref, w_ref, sg_ref, gdir_ref, adir_ref,
                 new_w_ref, delta_ref):
    age_mag = scalars_ref[0]       # learned scalar parameter (SMEM)
    magnitude = scalars_ref[1]     # forward() kwarg (SMEM)

    # Batch-invariant direction buffer: (1, LD).
    dir_v = gdir_ref[...] + adir_ref[...] * age_mag

    # Per-batch coefficient: (src_gender * 2 - 1) * magnitude, shape (Bt, 1).
    coeff = (sg_ref[...] * 2.0 - 1.0) * magnitude

    delta = coeff * dir_v                       # (Bt, LD) broadcast multiply
    delta_ref[...] = delta
    new_w_ref[...] = w_ref[...] + delta


def const_age_swapper(w, src_gender, gender_dir, age_dir, age_mag,
                      magnitude=1.0):
    """w: (B, L, D) f32; src_gender: (B,) f32; gender_dir/age_dir: (L, D) f32;
    age_mag: scalar f32. Returns (new_w, delta), both (B, L, D) f32."""
    B, L, D = w.shape
    LD = L * D

    # Lane-dense flatten (pure contiguous reshape).
    w2 = w.astype(jnp.float32).reshape(B, LD)
    gdir = gender_dir.astype(jnp.float32).reshape(1, LD)
    adir = age_dir.astype(jnp.float32).reshape(1, LD)
    sg = src_gender.astype(jnp.float32).reshape(B, 1)
    scalars = jnp.stack([jnp.asarray(age_mag, jnp.float32),
                         jnp.asarray(magnitude, jnp.float32)])

    # Batch tile: 3 full-width (Bt, LD) blocks (w, new_w, delta) x 2 pipeline
    # buffers kept within ~12 MiB so it fits comfortably on v5e/v6e/v7x
    # (vmem_limit_bytes raised to 32 MiB below for headroom).
    vmem_block_budget = 12 * 1024 * 1024
    row_bytes = LD * 4
    bt_cap = max(8, (vmem_block_budget // (6 * row_bytes)) // 8 * 8)
    if B <= bt_cap:
        bt, b_pad = B, B        # single grid step; block dims == full dims
    else:
        bt = bt_cap             # multiple of 8 -> satisfies (8, 128) tiling
        b_pad = int(pl.cdiv(B, bt)) * bt
        pad = b_pad - B
        if pad:
            w2 = jnp.pad(w2, ((0, pad), (0, 0)))
            sg = jnp.pad(sg, ((0, pad), (0, 0)))

    grid = (b_pad // bt,)

    grid_spec = pltpu.PrefetchScalarGridSpec(
        num_scalar_prefetch=0,
        grid=grid,
        in_specs=[
            # age_mag / magnitude scalars in SMEM.
            pl.BlockSpec(memory_space=pltpu.MemorySpace.SMEM),
            # w: one batch tile per grid step, lane-dense last dim.
            pl.BlockSpec((bt, LD), lambda i: (i, 0)),
            # per-batch gender flag, sliced with the same batch index map.
            pl.BlockSpec((bt, 1), lambda i: (i, 0)),
            # direction buffers: same full block every step.
            pl.BlockSpec((1, LD), lambda i: (0, 0)),
            pl.BlockSpec((1, LD), lambda i: (0, 0)),
        ],
        out_specs=[
            pl.BlockSpec((bt, LD), lambda i: (i, 0)),   # new_w
            pl.BlockSpec((bt, LD), lambda i: (i, 0)),   # delta
        ],
    )

    new_w, delta = pl.pallas_call(
        _swap_kernel,
        grid_spec=grid_spec,
        out_shape=(
            jax.ShapeDtypeStruct((b_pad, LD), jnp.float32),
            jax.ShapeDtypeStruct((b_pad, LD), jnp.float32),
        ),
        compiler_params=pltpu.CompilerParams(
            dimension_semantics=("parallel",),
            vmem_limit_bytes=32 * 1024 * 1024,
        ),
    )(scalars, w2, sg, gdir, adir)

    new_w = new_w[:B].reshape(B, L, D)
    delta = delta[:B].reshape(B, L, D)
    return new_w, delta


if __name__ == "__main__":
    key = jax.random.PRNGKey(0)
    k_w, k_g, k_a, k_s = jax.random.split(key, 4)

    # TODO(synk): original module loads direction buffers from .npy/.gz files;
    # replaced with deterministic random buffers here.
    B, L, D = 2, 8, 128          # small StyleGAN-style latent: (batch, layers, dim)
    w = jax.random.normal(k_w, (B, L, D), dtype=jnp.float32)
    gender_dir = jax.random.normal(k_g, (L, D), dtype=jnp.float32)
    age_dir = jax.random.normal(k_a, (L, D), dtype=jnp.float32)
    # src_gender in {0., 1.} per batch element
    src_gender = (jax.random.uniform(k_s, (B,)) > 0.5).astype(jnp.float32)

    # nn.Parameter(torch.tensor(0.0)) -> deterministic init of 0.0
    age_mag = jnp.float32(0.0)
    magnitude = 1.0

    new_w, delta = const_age_swapper(w, src_gender, gender_dir, age_dir,
                                     age_mag, magnitude)
    jax.block_until_ready((new_w, delta))

    # pure-JAX reference check
    sign = src_gender * 2.0 - 1.0
    dir_v = gender_dir + age_dir * age_mag
    delta_ref = sign[:, None, None] * dir_v[None] * magnitude
    new_w_ref = w + delta_ref
    assert jnp.allclose(new_w, new_w_ref, atol=1e-6)
    assert jnp.allclose(delta, delta_ref, atol=1e-6)

    print("KERNEL_OK")
</pallas_src>

<mosaic_0001>
module attributes {stable_mosaic.version = 11 : i64} {
  func.func @_swap_kernel(%arg0: i32, %arg1: memref<2xf32, #tpu.memory_space<smem>>, %arg2: memref<2x1024xf32, #tpu.memory_space<vmem>>, %arg3: memref<2x1xf32, #tpu.memory_space<vmem>>, %arg4: memref<1x1024xf32, #tpu.memory_space<vmem>>, %arg5: memref<1x1024xf32, #tpu.memory_space<vmem>>, %arg6: memref<2x1024xf32, #tpu.memory_space<vmem>>, %arg7: memref<2x1024xf32, #tpu.memory_space<vmem>>) attributes {dimension_semantics = [#tpu.dimension_semantics<parallel>], iteration_bounds = array<i64: 1>, scalar_prefetch = 0 : i64, scratch_operands = 0 : i64, tpu.core_type = #tpu.core_type<tc>, window_params = [{transform_indices = @transform_0, window_bounds = array<i64: 2>}, {transform_indices = @transform_1, window_bounds = array<i64: 2, 1024>}, {transform_indices = @transform_2, window_bounds = array<i64: 2, 1>}, {pipeline_mode = #tpu.pipeline_mode<synchronous>, transform_indices = @transform_3, window_bounds = array<i64: 1, 1024>}, {pipeline_mode = #tpu.pipeline_mode<synchronous>, transform_indices = @transform_4, window_bounds = array<i64: 1, 1024>}, {transform_indices = @transform_5, window_bounds = array<i64: 2, 1024>}, {transform_indices = @transform_6, window_bounds = array<i64: 2, 1024>}]} {
    %c0 = arith.constant 0 : index
    %0 = memref.load %arg1[%c0] : memref<2xf32, #tpu.memory_space<smem>>
    %c1 = arith.constant 1 : index
    %1 = memref.load %arg1[%c1] : memref<2xf32, #tpu.memory_space<smem>>
    %c0_0 = arith.constant 0 : index
    %c0_1 = arith.constant 0 : index
    %2 = vector.load %arg4[%c0_0, %c0_1] : memref<1x1024xf32, #tpu.memory_space<vmem>>, vector<1x1024xf32>
    %c0_2 = arith.constant 0 : index
    %c0_3 = arith.constant 0 : index
    %3 = vector.load %arg5[%c0_2, %c0_3] : memref<1x1024xf32, #tpu.memory_space<vmem>>, vector<1x1024xf32>
    %4 = vector.broadcast %0 : f32 to vector<1x1024xf32>
    %5 = arith.mulf %3, %4 : vector<1x1024xf32>
    %6 = arith.addf %2, %5 : vector<1x1024xf32>
    %c0_4 = arith.constant 0 : index
    %c0_5 = arith.constant 0 : index
    %7 = vector.load %arg3[%c0_4, %c0_5] : memref<2x1xf32, #tpu.memory_space<vmem>>, vector<2x1xf32>
    %cst = arith.constant 2.000000e+00 : f32
    %8 = vector.broadcast %cst : f32 to vector<2x1xf32>
    %9 = arith.mulf %7, %8 : vector<2x1xf32>
    %cst_6 = arith.constant 1.000000e+00 : f32
    %10 = vector.broadcast %cst_6 : f32 to vector<2x1xf32>
    %11 = arith.subf %9, %10 : vector<2x1xf32>
    %12 = vector.broadcast %1 : f32 to vector<2x1xf32>
    %13 = arith.mulf %11, %12 : vector<2x1xf32>
    %14 = vector.broadcast %13 : vector<2x1xf32> to vector<2x1024xf32>
    %15 = vector.broadcast %6 : vector<1x1024xf32> to vector<2x1024xf32>
    %16 = arith.mulf %14, %15 : vector<2x1024xf32>
    %c0_7 = arith.constant 0 : index
    %c0_8 = arith.constant 0 : index
    %17 = vector.load %arg7[%c0_7, %c0_8] : memref<2x1024xf32, #tpu.memory_space<vmem>>, vector<2x1024xf32>
    tpu.vector_store %arg7[%c0_7, %c0_8], %16 {strides = array<i32>} : memref<2x1024xf32, #tpu.memory_space<vmem>>, vector<2x1024xf32>,
    %c0_9 = arith.constant 0 : index
    %c0_10 = arith.constant 0 : index
    %18 = vector.load %arg2[%c0_9, %c0_10] : memref<2x1024xf32, #tpu.memory_space<vmem>>, vector<2x1024xf32>
    %19 = arith.addf %18, %16 : vector<2x1024xf32>
    %c0_11 = arith.constant 0 : index
    %c0_12 = arith.constant 0 : index
    %20 = vector.load %arg6[%c0_11, %c0_12] : memref<2x1024xf32, #tpu.memory_space<vmem>>, vector<2x1024xf32>
    tpu.vector_store %arg6[%c0_11, %c0_12], %19 {strides = array<i32>} : memref<2x1024xf32, #tpu.memory_space<vmem>>, vector<2x1024xf32>,
    return
  }
  func.func @transform_0(%arg0: i32) -> i32 {
    %c0_i32 = arith.constant 0 : i32
    %c0_i32_0 = arith.constant 0 : i32
    return %c0_i32 : i32
  }
  func.func @transform_1(%arg0: i32) -> (i32, i32) {
    %c0_i32 = arith.constant 0 : i32
    %c0_i32_0 = arith.constant 0 : i32
    return %arg0, %c0_i32 : i32, i32
  }
  func.func @transform_2(%arg0: i32) -> (i32, i32) {
    %c0_i32 = arith.constant 0 : i32
    %c0_i32_0 = arith.constant 0 : i32
    return %arg0, %c0_i32 : i32, i32
  }
  func.func @transform_3(%arg0: i32) -> (i32, i32) {
    %c0_i32 = arith.constant 0 : i32
    %c0_i32_0 = arith.constant 0 : i32
    %c0_i32_1 = arith.constant 0 : i32
    return %c0_i32, %c0_i32_0 : i32, i32
  }
  func.func @transform_4(%arg0: i32) -> (i32, i32) {
    %c0_i32 = arith.constant 0 : i32
    %c0_i32_0 = arith.constant 0 : i32
    %c0_i32_1 = arith.constant 0 : i32
    return %c0_i32, %c0_i32_0 : i32, i32
  }
  func.func @transform_5(%arg0: i32) -> (i32, i32) {
    %c0_i32 = arith.constant 0 : i32
    %c0_i32_0 = arith.constant 0 : i32
    return %arg0, %c0_i32 : i32, i32
  }
  func.func @transform_6(%arg0: i32) -> (i32, i32) {
    %c0_i32 = arith.constant 0 : i32
    %c0_i32_0 = arith.constant 0 : i32
    return %arg0, %c0_i32 : i32, i32
  }
}

</mosaic_0001>

<llo_original>
// kernel: tpu_custom_call.1
$region0: #{tpu_custom_call.1}
  #allocation0 [shape = 'u32[]', space=smem, size = 0x4, offset = 0x4, fixed_abs, tag = 'smem constant byte address 0x4 - core index']
  #allocation1 [shape = 'u32[144,128]{1,0:T(1,128)}', space=vmem, size = 0x12000, scoped, tag = 'internal scratch']
  %s0 = inlined_call_operand.vmem [shape: f32[2], index: 0, kind: input, shape index: {}]
  %s1 = inlined_call_operand.hbm [shape: f32[2,1024], index: 1, kind: input, shape index: {}]
  %s2 = inlined_call_operand.vmem [shape: f32[2,1], index: 2, kind: input, shape index: {}]
  %s3 = inlined_call_operand.vmem [shape: f32[1,1024], index: 3, kind: input, shape index: {}]
  %s4 = inlined_call_operand.vmem [shape: f32[1,1024], index: 4, kind: input, shape index: {}]
  %s5 = inlined_call_operand.hbm [shape: f32[2,1024], index: 5, kind: output, shape index: {0}]
  %s6 = inlined_call_operand.hbm [shape: f32[2,1024], index: 6, kind: output, shape index: {1}]
  %7 = xla_tuple %s5, %s6
  %s8 = sld [smem:[#allocation0]]
  $region46: #{tpu_custom_call.1} parent=0
    _
  %s10 = ssub.s32 1, %s8
  %s11 = scalar_select 0, %s10, %s8
  $region1: #{tpu_custom_call.1} parent=0
    #allocation2 [shape = 'u8[512]{0}', space=smem, size = 0x200, scoped, tag = 'input window, operand 0, single buffered']
    #allocation3 [shape = 's32[1]{0}', space=sflag, size = 0x4, scoped, tag = 'scoped memory for tpu_custom_call.1']
    #allocation4 [shape = 's32[1]{0}', space=sflag, size = 0x4, scoped, tag = 'scoped memory for tpu_custom_call.1']
    #allocation5 [shape = 's32[1]{0}', space=sflag, size = 0x4, scoped, tag = 'scoped memory for tpu_custom_call.1']
    #allocation6 [shape = 'u8[8192]{0}', space=vmem, size = 0x2000, scoped, tag = 'input window, operand 1, single buffered']
    #allocation7 [shape = 'u8[8192]{0}', space=vmem, size = 0x2000, scoped, tag = 'output window, operand 0, single buffered']
    #allocation8 [shape = 'u8[8192]{0}', space=vmem, size = 0x2000, scoped, tag = 'output window, operand 1, single buffered']
    #allocation9 [shape = 's32[1]{0}', space=sflag, size = 0x4, scoped, tag = 'scoped memory for tpu_custom_call.1']
    %12 = vsyncpa [#allocation5], 0
    %13 = vsyncpa [#allocation3], 0
    %14 = vsyncpa [#allocation4], 0
    %15 = vsyncpa [#allocation9], 0
    // Predicated region
    $region2: #{tpu_custom_call.1} parent=1 // pred_check
      _
    $region3: #{tpu_custom_call.1} parent=1 // pred_check_branch
      %17 = sbr.rel (0) target = $region5
    $region4: #{tpu_custom_call.1} parent=1 // pred_region
      %s19 = ssub.s32 16, 16
      %20 = vsyncadd [#allocation5], %s19
      %s22 = sshll.u32 %s0, 4
      %s23 = int_to_ptr.vmem [resolvable:$true] %s22
      %25 = dma.vmem_to_smem %s23, 16, [#allocation2], [#allocation5]
    $region5: #{tpu_custom_call.1} parent=1 // pred_fallthru
      _
    // Predicated region
    $region6: #{tpu_custom_call.1} parent=1 // pred_check
      _
    $region7: #{tpu_custom_call.1} parent=1 // pred_check_branch
      %27 = sbr.rel (0) target = $region9
    $region8: #{tpu_custom_call.1} parent=1 // pred_region
      %s29 = ssub.s32 256, 256
      %30 = vsyncadd [#allocation3], %s29
      %s32 = sshll.u32 [#allocation6], 4
      %s33 = int_to_ptr.vmem [resolvable:$true] %s32
      %35 = dma.hbm_to_vmem [thread:$0]  %s1, 256, %s33, [#allocation3]
    $region9: #{tpu_custom_call.1} parent=1 // pred_fallthru
      _
    // Predicated region
    $region10: #{tpu_custom_call.1} parent=1 // pred_check
      _
    $region11: #{tpu_custom_call.1} parent=1 // pred_check_branch
      %37 = sbr.rel (0) target = $region13
    $region12: #{tpu_custom_call.1} parent=1 // pred_region
      _
    $region13: #{tpu_custom_call.1} parent=1 // pred_fallthru
      _
    // Predicated region
    $region14: #{tpu_custom_call.1} parent=1 // pred_check
      _
    $region15: #{tpu_custom_call.1} parent=1 // pred_check_branch
      %39 = sbr.rel (0) target = $region17
    $region16: #{tpu_custom_call.1} parent=1 // pred_region
      _
    $region17: #{tpu_custom_call.1} parent=1 // pred_fallthru
      _
    // Predicated region
    $region18: #{tpu_custom_call.1} parent=1 // pred_check
      _
    $region19: #{tpu_custom_call.1} parent=1 // pred_check_branch
      %41 = sbr.rel (0) target = $region21
    $region20: #{tpu_custom_call.1} parent=1 // pred_region
      _
    $region21: #{tpu_custom_call.1} parent=1 // pred_fallthru
      _
    // Predicated region
    $region22: #{tpu_custom_call.1} parent=1 // pred_check
      _
    $region23: #{tpu_custom_call.1} parent=1 // pred_check_branch
      %43 = sbr.rel (0) target = $region25
    $region24: #{tpu_custom_call.1} parent=1 // pred_region
      %44 = dma.done [#allocation5], 16
    $region25: #{tpu_custom_call.1} parent=1 // pred_fallthru
      _
    // Predicated region
    $region26: #{tpu_custom_call.1} parent=1 // pred_check
      _
    $region27: #{tpu_custom_call.1} parent=1 // pred_check_branch
      %46 = sbr.rel (0) target = $region29
    $region28: #{tpu_custom_call.1} parent=1 // pred_region
      %47 = dma.done [#allocation3], 256
    $region29: #{tpu_custom_call.1} parent=1 // pred_fallthru
      _
    %48 = sfence
    %s49 = sld [smem:[#allocation2]]
    %s50 = sld [smem:[#allocation2 + $0x1]]
    %v51 = vld [vmem:[%s3] sm:$0xff]
    %v52 = vld [vmem:[%s4] sm:$0xff]
    %v53 = vstv %s49
    %v54 = vmul.f32 %v52, %v53
    %v55 = vadd.f32 %v51, %v54
    %v56 = vld [vmem:[%s2] sm:$0x3]
    %v57 = vmul.f32 %v56, 2.0
    %v58 = vsub.f32 %v57, 1.0
    %v59 = vstv %s50
    %v60 = vmul.f32 %v58, %v59
    %62 = vset.pattern.permute.xlu0 0
    %63 = vperm.xlu0 %62, %v60
    %v64 = vpop.permute.xlu0 %63
    %v67 = vlaneseq
    %v68 = vshrl.u32 %v67, 7
    %v69 = vsub.s32 0, %v68
    %v70 = vrot.slane %v55, %v69
    %v71 = vlaneseq
    %v72 = vshrl.u32 %v71, 7
    %v73 = vsub.s32 1, %v72
    %v74 = vrot.slane %v55, %v73
    %v75 = vlaneseq
    %v76 = vshrl.u32 %v75, 7
    %v77 = vsub.s32 2, %v76
    %v78 = vrot.slane %v55, %v77
    %v79 = vlaneseq
    %v80 = vshrl.u32 %v79, 7
    %v81 = vsub.s32 3, %v80
    %v82 = vrot.slane %v55, %v81
    %v83 = vlaneseq
    %v84 = vshrl.u32 %v83, 7
    %v85 = vsub.s32 4, %v84
    %v86 = vrot.slane %v55, %v85
    %v87 = vlaneseq
    %v88 = vshrl.u32 %v87, 7
    %v89 = vsub.s32 5, %v88
    %v90 = vrot.slane %v55, %v89
    %v91 = vlaneseq
    %v92 = vshrl.u32 %v91, 7
    %v93 = vsub.s32 6, %v92
    %v94 = vrot.slane %v55, %v93
    %v95 = vlaneseq
    %v96 = vshrl.u32 %v95, 7
    %v97 = vsub.s32 7, %v96
    %v98 = vrot.slane %v55, %v97
    %v107 = vmul.f32 %v64, %v70
    %v108 = vmul.f32 %v64, %v74
    %v109 = vmul.f32 %v64, %v78
    %v110 = vmul.f32 %v64, %v82
    %v111 = vmul.f32 %v64, %v86
    %v112 = vmul.f32 %v64, %v90
    %v113 = vmul.f32 %v64, %v94
    %v114 = vmul.f32 %v64, %v98
    %v123 = vcombine.low %v107, %v108
    %v124 = vcombine.low %v109, %v110
    %v126 = vunpack.c.l.s4 1983009808
    %v127 = vunpack.c.0.s8 %v126
    %v128 = vlaneseq
    %v129 = vshrl.u32 %v128, 7
    %v130 = vsub.s32 %v127, %v129
    %v131 = vrot.slane %v123, %v130
    %v133 = vunpack.c.l.s4 1983009808
    %v134 = vunpack.c.0.s8 %v133
    %v135 = vlaneseq
    %v136 = vshrl.u32 %v135, 7
    %v137 = vsub.s32 %v134, %v136
    %v138 = vrot.slane %v124, %v137
    %v139 = vcombine.low %v131, %v138
    %v140 = vcombine.low %v111, %v112
    %v141 = vcombine.low %v113, %v114
    %v143 = vunpack.c.l.s4 1983009808
    %v144 = vunpack.c.0.s8 %v143
    %v145 = vlaneseq
    %v146 = vshrl.u32 %v145, 7
    %v147 = vsub.s32 %v144, %v146
    %v148 = vrot.slane %v140, %v147
    %v150 = vunpack.c.l.s4 1983009808
    %v151 = vunpack.c.0.s8 %v150
    %v152 = vlaneseq
    %v153 = vshrl.u32 %v152, 7
    %v154 = vsub.s32 %v151, %v153
    %v155 = vrot.slane %v141, %v154
    %v156 = vcombine.low %v148, %v155
    %159 = vst [vmem:[#allocation8] sm:$0xff] %v139
    %160 = vst [vmem:[#allocation8 + $0x8] sm:$0xff] %v156
    %v161 = vld [vmem:[#allocation6] sm:$0xff]
    %v162 = vld [vmem:[#allocation6 + $0x8] sm:$0xff]
    %v163 = vadd.f32 %v161, %v139
    %v164 = vadd.f32 %v162, %v156
    %165 = vst [vmem:[#allocation7] sm:$0xff] %v163
    %166 = vst [vmem:[#allocation7 + $0x8] sm:$0xff] %v164
    // Predicated region
    $region30: #{tpu_custom_call.1} parent=1 // pred_check
      _
    $region31: #{tpu_custom_call.1} parent=1 // pred_check_branch
      %168 = sbr.rel (0) target = $region33
    $region32: #{tpu_custom_call.1} parent=1 // pred_region
      %s170 = ssub.s32 256, 256
      %171 = vsyncadd [#allocation4], %s170
      %s173 = sshll.u32 [#allocation7], 4
      %s174 = int_to_ptr.vmem [resolvable:$true] %s173
      %176 = dma.vmem_to_hbm [thread:$0]  %s174, 256, %s5, [#allocation4]
    $region33: #{tpu_custom_call.1} parent=1 // pred_fallthru
      _
    // Predicated region
    $region34: #{tpu_custom_call.1} parent=1 // pred_check
      _
    $region35: #{tpu_custom_call.1} parent=1 // pred_check_branch
      %178 = sbr.rel (0) target = $region37
    $region36: #{tpu_custom_call.1} parent=1 // pred_region
      %s180 = ssub.s32 256, 256
      %181 = vsyncadd [#allocation9], %s180
      %s183 = sshll.u32 [#allocation8], 4
      %s184 = int_to_ptr.vmem [resolvable:$true] %s183
      %186 = dma.vmem_to_hbm [thread:$0]  %s184, 256, %s6, [#allocation9]
    $region37: #{tpu_custom_call.1} parent=1 // pred_fallthru
      _
    // Predicated region
    $region38: #{tpu_custom_call.1} parent=1 // pred_check
      _
    $region39: #{tpu_custom_call.1} parent=1 // pred_check_branch
      %188 = sbr.rel (0) target = $region41
    $region40: #{tpu_custom_call.1} parent=1 // pred_region
      %189 = dma.done [#allocation4], 256
    $region41: #{tpu_custom_call.1} parent=1 // pred_fallthru
      _
    // Predicated region
    $region42: #{tpu_custom_call.1} parent=1 // pred_check
      _
    $region43: #{tpu_custom_call.1} parent=1 // pred_check_branch
      %191 = sbr.rel (0) target = $region45
    $region44: #{tpu_custom_call.1} parent=1 // pred_region
      %192 = dma.done [#allocation9], 256
    $region45: #{tpu_custom_call.1} parent=1 // pred_fallthru
      _
    %193 = vsyncpa [#allocation3], 1
    %194 = vsyncpa [#allocation4], 1
    %195 = vsyncpa [#allocation9], 1
    %196 = vsyncpa [#allocation5], 1

</llo_original>
